<compile_context>
chip_gen: v7x
topology: tpu7x:2x2x1
jax: 0.10.0
libtpu: 0.0.40
codegen_flags: <defaults>
</compile_context>

<pallas_src>
import functools

import numpy as np
import jax
import jax.numpy as jnp
from jax.experimental import pallas as pl
from jax.experimental.pallas import tpu as pltpu

IGNORE_LABEL = 255

_TM_CAP_ROWS = 4096            # absolute cap on rows per block
_BLOCK_BYTES = 2 * 1024 * 1024  # ~2 MiB of feature bytes per grid step


def _pick_tm(n_rows, lane_width, itemsize):
    """Rows per block: ~2 MiB blocks, multiple of 16, >=2 blocks when possible."""
    if n_rows <= 16:
        return n_rows                               # full-array block: always legal
    padded_lanes = ((lane_width + 127) // 128) * 128  # VMEM lane padding
    by_vmem = max(16, _BLOCK_BYTES // (padded_lanes * itemsize))
    half = (pl.cdiv(n_rows, 2) + 15) // 16 * 16       # at least 2 blocks (megacore)
    tm = min(_TM_CAP_ROWS, by_vmem, half)
    return max(16, (tm // 16) * 16)


# ----------------------------------------------------------------------------
# Packed kernel: C divides 128, features viewed as a lane-dense (M, 128) slab.
# Each row holds R = 128 // C pixels, each occupying C consecutive lanes.
# ----------------------------------------------------------------------------
def _var_loss_packed_kernel(c_ref, feat_ref, lab_ref, out_ref, *, n_cls, pix_per_row):
    """c_ref   : SMEM (1,)  int32  -- selected instance id (scalar prefetch)
       feat_ref: VMEM (TM, 128)    -- native-dtype packed logits
       lab_ref : VMEM (TM, R) i32  -- per-pixel labels (-1 on padded rows)
       out_ref : VMEM (8, 128) f32 -- partial sum at [0,0], zeros elsewhere
    """
    c = c_ref[0]
    f = feat_ref[...].astype(jnp.float32)                      # upcast in-kernel
    f2 = f * f

    # column index within each pixel's C-wide lane group (C is a power of two).
    lane = jax.lax.broadcasted_iota(jnp.int32, f.shape, 1)     # (TM, 128)
    col_keep = (lane & (n_cls - 1)) != c                       # column != c

    # expand per-pixel selection (TM, R) -> (TM, 128) via a tiny MXU matmul:
    # E[p, l] = 1.0 where lane l belongs to pixel slot p (p*C <= l < (p+1)*C).
    sel = (lab_ref[...] == c).astype(jnp.float32)              # (TM, R)
    p_idx = jax.lax.broadcasted_iota(jnp.int32, (pix_per_row, 128), 0)
    l_idx = jax.lax.broadcasted_iota(jnp.int32, (pix_per_row, 128), 1)
    p_start = p_idx * n_cls
    expand = ((l_idx >= p_start) & (l_idx < p_start + n_cls)).astype(jnp.float32)
    sel_e = jnp.dot(sel, expand, preferred_element_type=jnp.float32)  # (TM, 128)

    keep = (sel_e > 0.5) & col_keep                            # exact 0/1 values
    partial = jnp.sum(jnp.where(keep, f2, 0.0))                # NaN-safe vs garbage

    r = jax.lax.broadcasted_iota(jnp.int32, (8, 128), 0)
    l = jax.lax.broadcasted_iota(jnp.int32, (8, 128), 1)
    out_ref[...] = jnp.where((r == 0) & (l == 0), partial, 0.0)


# ----------------------------------------------------------------------------
# Fallback kernel: block last dim = full class dim (any C), no feature copy.
# ----------------------------------------------------------------------------
def _var_loss_direct_kernel(c_ref, feat_ref, lab_ref, out_ref):
    """feat_ref: (TM, C) native dtype; lab_ref: (TM, 1) int32 (-1 on padding)."""
    c = c_ref[0]
    f = feat_ref[...].astype(jnp.float32)
    col = jax.lax.broadcasted_iota(jnp.int32, f.shape, 1)
    keep = (lab_ref[...] == c) & (col != c)
    partial = jnp.sum(jnp.where(keep, f * f, 0.0))

    r = jax.lax.broadcasted_iota(jnp.int32, (8, 128), 0)
    l = jax.lax.broadcasted_iota(jnp.int32, (8, 128), 1)
    out_ref[...] = jnp.where((r == 0) & (l == 0), partial, 0.0)


# ----------------------------------------------------------------------------
# Wrapper: VarLoss forward
# ----------------------------------------------------------------------------
def var_loss(logits, targets, num_classes):
    """logits: (N, C) float (f32 or bf16), targets: (N,) int, num_classes: int."""
    logits = jnp.asarray(logits)
    if logits.dtype not in (jnp.float32, jnp.bfloat16):
        logits = logits.astype(jnp.float32)
    targets = jnp.asarray(targets, jnp.int32).reshape(-1)
    n, c_dim = logits.shape
    if n == 0:
        return jnp.float32(0.0)

    # The PyTorch loop overwrites `loss`: only the LARGEST valid id survives.
    valid = (targets != num_classes) & (targets != IGNORE_LABEL)
    any_valid = jnp.any(valid)
    int_min = jnp.iinfo(jnp.int32).min
    c_last = jnp.max(jnp.where(valid, targets, int_min))
    c_sel = jnp.where(any_valid, c_last, jnp.int32(num_classes)).astype(jnp.int32)
    count = jnp.sum((targets == c_sel).astype(jnp.float32))

    use_packed = (c_dim <= 128) and (128 % c_dim == 0) and ((n * c_dim) % 128 == 0)

    if use_packed:
        r_pix = 128 // c_dim
        m_rows = (n * c_dim) // 128
        feat = logits.reshape(m_rows, 128)          # free: contiguous reinterpret
        tm = _pick_tm(m_rows, 128, logits.dtype.itemsize)
        g = pl.cdiv(m_rows, tm)
        lab = targets.reshape(m_rows, r_pix)        # R pixel labels per packed row
        pad = g * tm - m_rows
        if pad:                                     # pad ONLY the tiny label array
            lab = jnp.pad(lab, ((0, pad), (0, 0)), constant_values=-1)
        kernel = functools.partial(_var_loss_packed_kernel,
                                   n_cls=c_dim, pix_per_row=r_pix)
        in_specs = [pl.BlockSpec((tm, 128), lambda i, c: (i, 0)),
                    pl.BlockSpec((tm, r_pix), lambda i, c: (i, 0))]
    else:
        feat = logits                               # no copy: full last dim blocks
        tm = _pick_tm(n, c_dim, logits.dtype.itemsize)
        g = pl.cdiv(n, tm)
        lab = targets.reshape(n, 1)
        pad = g * tm - n
        if pad:
            lab = jnp.pad(lab, ((0, pad), (0, 0)), constant_values=-1)
        kernel = _var_loss_direct_kernel
        in_specs = [pl.BlockSpec((tm, c_dim), lambda i, c: (i, 0)),
                    pl.BlockSpec((tm, 1), lambda i, c: (i, 0))]

    partials = pl.pallas_call(
        kernel,
        out_shape=jax.ShapeDtypeStruct((g * 8, 128), jnp.float32),
        grid_spec=pltpu.PrefetchScalarGridSpec(
            num_scalar_prefetch=1,
            grid=(g,),
            in_specs=in_specs,
            out_specs=pl.BlockSpec((8, 128), lambda i, c: (i, 0)),
        ),
        compiler_params=pltpu.CompilerParams(
            dimension_semantics=("parallel",)),
    )(c_sel.reshape(1), feat, lab)

    sq_sum = jnp.sum(partials)                      # all-zero except one slot/block
    denom = jnp.maximum(count, 1.0) * jnp.float32(c_dim)  # true count * true C
    return jnp.where(any_valid, sq_sum / denom, jnp.float32(0.0))


# ----------------------------------------------------------------------------
# Numpy reference replicating the PyTorch VarLoss.forward exactly
# ----------------------------------------------------------------------------
def _var_loss_reference(features, label, num_classes):
    features = np.asarray(features, dtype=np.float64)
    label = np.asarray(label)
    loss = 0.0
    instances, counts = np.unique(label, return_counts=True)
    _ = int(np.sum(counts))  # total_size, unused (as in the original module)
    for instance in instances:
        if instance == num_classes or instance == IGNORE_LABEL:
            continue
        locs = np.where(label == instance)[0]
        vectors = features[locs, :]
        proto = np.zeros_like(vectors)
        proto[:, int(instance)] = vectors[:, int(instance)]
        loss = float(np.mean((vectors - proto) ** 2))  # overwritten each iter
    return float(loss)


if __name__ == "__main__":
    key = jax.random.PRNGKey(0)
    B, H, W = 2, 16, 16          # 2 x 16 x 16 = 512 flattened "pixels"
    C = 8                        # logit channels (divides 128 -> packed path)
    NUM_CLASSES = 8              # void label value the loop skips
    N = B * H * W

    logits = jax.random.normal(key, (N, C), dtype=jnp.float32)

    # Deterministic labels: classes 0..7 plus a few ignore (255) / void (8).
    tgt = (jnp.arange(N, dtype=jnp.int32) % (C - 1))          # 0..6
    tgt = tgt.at[::17].set(7)
    tgt = tgt.at[::23].set(IGNORE_LABEL)
    tgt = tgt.at[::31].set(NUM_CLASSES)

    loss = jax.block_until_ready(var_loss(logits, tgt, NUM_CLASSES))
    ref = _var_loss_reference(np.asarray(logits), np.asarray(tgt), NUM_CLASSES)
    np.testing.assert_allclose(float(loss), ref, rtol=1e-4, atol=1e-6)

    # Edge case: no valid instance at all -> loss is exactly 0.0
    tgt_ign = jnp.full((N,), IGNORE_LABEL, dtype=jnp.int32)
    loss0 = jax.block_until_ready(var_loss(logits, tgt_ign, NUM_CLASSES))
    np.testing.assert_allclose(float(loss0), 0.0, atol=1e-7)

    print("KERNEL_OK")
</pallas_src>

<mosaic_0001>
module attributes {stable_mosaic.version = 11 : i64} {
  func.func @_var_loss_packed_kernel(%arg0: i32, %arg1: memref<1xi32, #tpu.memory_space<smem>>, %arg2: memref<16x128xf32, #tpu.memory_space<vmem>>, %arg3: memref<16x16xi32, #tpu.memory_space<vmem>>, %arg4: memref<8x128xf32, #tpu.memory_space<vmem>>) attributes {dimension_semantics = [#tpu.dimension_semantics<parallel>], iteration_bounds = array<i64: 2>, scalar_prefetch = 1 : i64, scratch_operands = 0 : i64, tpu.core_type = #tpu.core_type<tc>, window_params = [{transform_indices = @transform_0, window_bounds = array<i64: 16, 128>}, {transform_indices = @transform_1, window_bounds = array<i64: 16, 16>}, {transform_indices = @transform_2, window_bounds = array<i64: 8, 128>}]} {
    %c0 = arith.constant 0 : index
    %0 = memref.load %arg1[%c0] : memref<1xi32, #tpu.memory_space<smem>>
    %c0_0 = arith.constant 0 : index
    %c0_1 = arith.constant 0 : index
    %1 = vector.load %arg2[%c0_0, %c0_1] : memref<16x128xf32, #tpu.memory_space<vmem>>, vector<16x128xf32>
    %2 = arith.mulf %1, %1 : vector<16x128xf32>
    %3 = tpu.iota {dimensions = array<i32: 1>} : vector<16x128xi32>
    %c7_i32 = arith.constant 7 : i32
    %4 = vector.broadcast %c7_i32 : i32 to vector<16x128xi32>
    %5 = arith.andi %3, %4 : vector<16x128xi32>
    %6 = vector.broadcast %0 : i32 to vector<16x128xi32>
    %7 = arith.cmpi ne, %5, %6 : vector<16x128xi32>
    %c0_2 = arith.constant 0 : index
    %c0_3 = arith.constant 0 : index
    %8 = vector.load %arg3[%c0_2, %c0_3] : memref<16x16xi32, #tpu.memory_space<vmem>>, vector<16x16xi32>
    %9 = vector.broadcast %0 : i32 to vector<16x16xi32>
    %10 = arith.cmpi eq, %8, %9 : vector<16x16xi32>
    %11 = arith.extui %10 : vector<16x16xi1> to vector<16x16xi32>
    %12 = arith.sitofp %11 : vector<16x16xi32> to vector<16x16xf32>
    %13 = tpu.iota {dimensions = array<i32: 0>} : vector<16x128xi32>
    %14 = tpu.iota {dimensions = array<i32: 1>} : vector<16x128xi32>
    %c8_i32 = arith.constant 8 : i32
    %15 = vector.broadcast %c8_i32 : i32 to vector<16x128xi32>
    %16 = arith.muli %13, %15 : vector<16x128xi32>
    %17 = arith.cmpi sge, %14, %16 : vector<16x128xi32>
    %c8_i32_4 = arith.constant 8 : i32
    %18 = vector.broadcast %c8_i32_4 : i32 to vector<16x128xi32>
    %19 = arith.addi %16, %18 : vector<16x128xi32>
    %20 = arith.cmpi slt, %14, %19 : vector<16x128xi32>
    %21 = arith.andi %17, %20 : vector<16x128xi1>
    %22 = arith.extui %21 : vector<16x128xi1> to vector<16x128xi32>
    %23 = arith.sitofp %22 : vector<16x128xi32> to vector<16x128xf32>
    %cst = arith.constant dense<0.000000e+00> : vector<16x128xf32>
    %24 = tpu.matmul %12, %23, %cst {dimension_numbers = #tpu.dot_dimension_numbers<[1], [0], [0], [1], [0, 0, 1, 1], [], []>} : vector<16x16xf32>, vector<16x128xf32>, vector<16x128xf32> -> vector<16x128xf32>
    %cst_5 = arith.constant 5.000000e-01 : f32
    %25 = vector.broadcast %cst_5 : f32 to vector<16x128xf32>
    %26 = arith.cmpf ogt, %24, %25 : vector<16x128xf32>
    %27 = arith.andi %26, %7 : vector<16x128xi1>
    %cst_6 = arith.constant 0.000000e+00 : f32
    %28 = vector.broadcast %cst_6 : f32 to vector<16x128xf32>
    %29 = arith.select %27, %2, %28 : vector<16x128xi1>, vector<16x128xf32>
    %30 = vector.shape_cast %29 : vector<16x128xf32> to vector<1x16x128xf32>
    %cst_7 = arith.constant dense<0.000000e+00> : vector<1xf32>
    %31 = vector.multi_reduction <add>, %30, %cst_7 [1, 2] : vector<1x16x128xf32> to vector<1xf32>
    %32 = vector.shape_cast %31 : vector<1xf32> to vector<1x1x1xf32>
    %33 = vector.extract %32[0, 0, 0] : f32 from vector<1x1x1xf32>
    %34 = tpu.iota {dimensions = array<i32: 0>} : vector<8x128xi32>
    %35 = tpu.iota {dimensions = array<i32: 1>} : vector<8x128xi32>
    %c0_i32 = arith.constant 0 : i32
    %36 = vector.broadcast %c0_i32 : i32 to vector<8x128xi32>
    %37 = arith.cmpi eq, %34, %36 : vector<8x128xi32>
    %c0_i32_8 = arith.constant 0 : i32
    %38 = vector.broadcast %c0_i32_8 : i32 to vector<8x128xi32>
    %39 = arith.cmpi eq, %35, %38 : vector<8x128xi32>
    %40 = arith.andi %37, %39 : vector<8x128xi1>
    %cst_9 = arith.constant 0.000000e+00 : f32
    %41 = vector.broadcast %33 : f32 to vector<8x128xf32>
    %42 = vector.broadcast %cst_9 : f32 to vector<8x128xf32>
    %43 = arith.select %40, %41, %42 : vector<8x128xi1>, vector<8x128xf32>
    %c0_10 = arith.constant 0 : index
    %c0_11 = arith.constant 0 : index
    %44 = vector.load %arg4[%c0_10, %c0_11] : memref<8x128xf32, #tpu.memory_space<vmem>>, vector<8x128xf32>
    tpu.vector_store %arg4[%c0_10, %c0_11], %43 {strides = array<i32>} : memref<8x128xf32, #tpu.memory_space<vmem>>, vector<8x128xf32>,
    return
  }
  func.func @transform_0(%arg0: i32, %arg1: memref<1xi32, #tpu.memory_space<smem>>) -> (i32, i32) {
    %c0_i32 = arith.constant 0 : i32
    %c0_i32_0 = arith.constant 0 : i32
    return %arg0, %c0_i32 : i32, i32
  }
  func.func @transform_1(%arg0: i32, %arg1: memref<1xi32, #tpu.memory_space<smem>>) -> (i32, i32) {
    %c0_i32 = arith.constant 0 : i32
    %c0_i32_0 = arith.constant 0 : i32
    return %arg0, %c0_i32 : i32, i32
  }
  func.func @transform_2(%arg0: i32, %arg1: memref<1xi32, #tpu.memory_space<smem>>) -> (i32, i32) {
    %c0_i32 = arith.constant 0 : i32
    %c0_i32_0 = arith.constant 0 : i32
    return %arg0, %c0_i32 : i32, i32
  }
}

</mosaic_0001>

<llo_original>
// kernel: tpu_custom_call.1
$region0: #{tpu_custom_call.1}
  #allocation0 [shape = 'u32[]', space=smem, size = 0x4, offset = 0x4, fixed_abs, tag = 'smem constant byte address 0x4 - core index']
  #allocation1 [shape = 'u32[144,128]{1,0:T(1,128)}', space=vmem, size = 0x12000, scoped, tag = 'internal scratch']
  #allocation2 [shape = 's32[1]{0}', space=sflag, size = 0x4, scoped, tag = 'scoped memory for tpu_custom_call.1']
  #allocation3 [shape = 's32[1]{0:T(128)S(6)}', space=smem, size = 0x200, scoped, tag = 'prefetched SMEM operand 0']
  %s0 = inlined_call_operand.<no memory space> [shape: s32[1], index: 0, kind: input, shape index: {}]
  %s1 = inlined_call_operand.vmem [shape: f32[32,128], index: 1, kind: input, shape index: {}]
  %s2 = inlined_call_operand.vmem [shape: s32[32,16], index: 2, kind: input, shape index: {}]
  %s3 = inlined_call_operand.hbm [shape: f32[16,128], index: 3, kind: output, shape index: {}]
  %s4 = sld [smem:[#allocation0]]
  $region41: #{tpu_custom_call.1} parent=0
    _
  %s6 = ssub.s32 1, %s4
  %s7 = scalar_select 0, %s6, %s4
  %8 = sst [smem:[#allocation3]] %s0
  $region1: #{tpu_custom_call.1} parent=0
    #allocation4 [shape = 'u8[8192]{0}', space=vmem, size = 0x2000, scoped, tag = 'output window, operand 0']
    #allocation5 [shape = 's32[2]{0}', space=sflag, size = 0x8, scoped, tag = 'scoped memory for tpu_custom_call.1']
    %9 = vsyncpa [#allocation5], 0
    %s10 = scalar_lea.sflag [#allocation5], 1
    %11 = vsyncpa %s10, 0
    loop: start=0, step=1, limit=4
    $region2: #{tpu_custom_call.1} parent=1 // loop_pre_header
      _
    $region3: #{tpu_custom_call.1} parent=1 // loop_header
      %s13 = sphi 0, %s17
      %p14 = scmp.ge.s32.totalorder %s13, 4
      %s23 = sphi 0, %s25
      %s26 = sphi 0, %s23
      %s27 = sphi 0, %s26
      %s43 = sphi 0, %s27
      %s49 = sphi 0, %s51
      %s52 = sphi 0, %s49
      %s53 = sphi 0, %s52
      %s69 = sphi 0, %s53
      %s75 = sphi 0, %s77
      %s78 = sphi 0, %s75
      %s79 = sphi 0, %s78
      %s95 = sphi 0, %s79
    $region4: #{tpu_custom_call.1} parent=1 // loop_header_branch
      %16 = sbr.rel (%p14) target = $region8
    $region5: #{tpu_custom_call.1} parent=1 // loop_body
      %s18 = ssub.s32 %s13, 1
      %s19 = ssub.s32 %s13, 2
      %s20 = sadd.s32 %s13, 1
      %s21 = ssub.s32 %s13, %s20
      %p22 = scmp.eq.s32.totalorder %s21, 0
      %s24 = sadd.s32 %s23, 1
      %s25 = scalar_select %p22, %s23, %s24
      %p28 = pneg %p22
      %p29 = scmp.eq.s32.totalorder %s13, 1
      %p30 = por %p28, %p29
      %p31 = scmp.ne.s32.totalorder %s23, %s26
      %p32 = scmp.eq.s32.totalorder %s13, 0
      %p33 = por %p31, %p32
      %p34 = scmp.ne.s32.totalorder %s23, %s26
      %p35 = scmp.eq.s32.totalorder %s18, 1
      %p36 = por %p34, %p35
      %p37 = scmp.ne.s32.totalorder %s26, %s27
      %p38 = scmp.eq.s32.totalorder %s18, 0
      %p39 = por %p37, %p38
      %p40 = scmp.ne.s32.totalorder %s26, %s27
      %p41 = scmp.eq.s32.totalorder %s19, 1
      %p42 = por %p40, %p41
      %p44 = scmp.ne.s32.totalorder %s27, %s43
      %p45 = scmp.eq.s32.totalorder %s19, 0
      %p46 = por %p44, %p45
      %s47 = ssub.s32 %s13, %s20
      %p48 = scmp.eq.s32.totalorder %s47, 0
      %s50 = sadd.s32 %s49, 1
      %s51 = scalar_select %p48, %s49, %s50
      %p54 = pneg %p48
      %p55 = scmp.eq.s32.totalorder %s13, 1
      %p56 = por %p54, %p55
      %p57 = scmp.ne.s32.totalorder %s49, %s52
      %p58 = scmp.eq.s32.totalorder %s13, 0
      %p59 = por %p57, %p58
      %p60 = scmp.ne.s32.totalorder %s49, %s52
      %p61 = scmp.eq.s32.totalorder %s18, 1
      %p62 = por %p60, %p61
      %p63 = scmp.ne.s32.totalorder %s52, %s53
      %p64 = scmp.eq.s32.totalorder %s18, 0
      %p65 = por %p63, %p64
      %p66 = scmp.ne.s32.totalorder %s52, %s53
      %p67 = scmp.eq.s32.totalorder %s19, 1
      %p68 = por %p66, %p67
      %p70 = scmp.ne.s32.totalorder %s53, %s69
      %p71 = scmp.eq.s32.totalorder %s19, 0
      %p72 = por %p70, %p71
      %s73 = ssub.s32 %s13, %s20
      %p74 = scmp.eq.s32.totalorder %s73, 0
      %s76 = sadd.s32 %s75, 1
      %s77 = scalar_select %p74, %s75, %s76
      %p80 = pneg %p74
      %p81 = scmp.eq.s32.totalorder %s13, 1
      %p82 = por %p80, %p81
      %p83 = scmp.ne.s32.totalorder %s75, %s78
      %p84 = scmp.eq.s32.totalorder %s13, 0
      %p85 = por %p83, %p84
      %p86 = scmp.ne.s32.totalorder %s75, %s78
      %p87 = scmp.eq.s32.totalorder %s18, 1
      %p88 = por %p86, %p87
      %p89 = scmp.ne.s32.totalorder %s78, %s79
      %p90 = scmp.eq.s32.totalorder %s18, 0
      %p91 = por %p89, %p90
      %p92 = scmp.ne.s32.totalorder %s78, %s79
      %p93 = scmp.eq.s32.totalorder %s19, 1
      %p94 = por %p92, %p93
      %p96 = scmp.ne.s32.totalorder %s79, %s95
      %p97 = scmp.eq.s32.totalorder %s19, 0
      %p98 = por %p96, %p97
      %p99 = scmp.le.s32.totalorder 1, %s13
      %p100 = scmp.lt.s32.totalorder %s13, 3
      %p101 = pnand %p99, %p100
      %p102 = pneg %p101
      // Predicated region
      $region9: #{tpu_custom_call.1} parent=5 // pred_check
        _
      $region10: #{tpu_custom_call.1} parent=5 // pred_check_branch
        %104 = sbr.rel (%p101) target = $region12
      $region11: #{tpu_custom_call.1} parent=5 // pred_region
        %s105 = ssub.s32 %s13, 1
      $region12: #{tpu_custom_call.1} parent=5 // pred_fallthru
        _
      %p106 = scmp.lt.s32.totalorder %s13, 2
      // Predicated region
      $region13: #{tpu_custom_call.1} parent=5 // pred_check
        %p107 = pneg %p106
      $region14: #{tpu_custom_call.1} parent=5 // pred_check_branch
        %109 = sbr.rel (%p107) target = $region16
      $region15: #{tpu_custom_call.1} parent=5 // pred_region
        // Predicated region
        $region17: #{tpu_custom_call.1} parent=15 // pred_check
          %p110 = pneg %p33
        $region18: #{tpu_custom_call.1} parent=15 // pred_check_branch
          %112 = sbr.rel (%p110) target = $region20
        $region19: #{tpu_custom_call.1} parent=15 // pred_region
          %s113 = smul.u32 2, %s13
          %p114 = scmp.lt.s32.totalorder %s113, 3
          %s115 = scalar_select %p114, %s113, 3
          %s116 = smul.addr %s115, 8
          %s117 = scalar_lea.vmem %s1, %s116
          %s118 = smul.u32 2, %s13
        $region20: #{tpu_custom_call.1} parent=15 // pred_fallthru
          _
        // Predicated region
        $region21: #{tpu_custom_call.1} parent=15 // pred_check
          %p119 = pneg %p59
        $region22: #{tpu_custom_call.1} parent=15 // pred_check_branch
          %121 = sbr.rel (%p119) target = $region24
        $region23: #{tpu_custom_call.1} parent=15 // pred_region
          %s122 = smul.u32 2, %s13
          %p123 = scmp.lt.s32.totalorder %s122, 3
          %s124 = scalar_select %p123, %s122, 3
          %s125 = smul.addr %s124, 8
          %s126 = scalar_lea.vmem %s2, %s125
          %s127 = smul.u32 2, %s13
        $region24: #{tpu_custom_call.1} parent=15 // pred_fallthru
          _
      $region16: #{tpu_custom_call.1} parent=5 // pred_fallthru
        _
      %p128 = scmp.le.s32.totalorder 1, %s13
      %p129 = scmp.lt.s32.totalorder %s13, 3
      %p130 = pnand %p128, %p129
      %p131 = pneg %p130
      // Predicated region
      $region25: #{tpu_custom_call.1} parent=5 // pred_check
        _
      $region26: #{tpu_custom_call.1} parent=5 // pred_check_branch
        %133 = sbr.rel (%p130) target = $region28
      $region27: #{tpu_custom_call.1} parent=5 // pred_region
        %s134 = ssub.s32 %s13, 1
        %s135 = smul.u32 2, %s18
        %p136 = scmp.lt.s32.totalorder %s135, 3
        %s137 = scalar_select %p136, %s135, 3
        %s138 = smul.addr %s137, 8
        %s139 = scalar_lea.vmem %s1, %s138
        %p140 = pneg %p39
        %p141 = pneg %p36
        %s142 = smul.u32 2, %s18
        %p143 = scmp.lt.s32.totalorder %s142, 3
        %s144 = scalar_select %p143, %s142, 3
        %s145 = smul.addr %s144, 8
        %s146 = scalar_lea.vmem %s2, %s145
        %p147 = pneg %p65
        %p148 = pneg %p62
        %p149 = pneg %p91
        %p150 = pneg %p88
        %s151 = sand.u32 %s78, 1
        %s152 = scalar_lea.sflag [#allocation5], %s151
        %s153 = sand.u32 %s78, 1
        %s154 = smul.addr %s153, 8
        %s155 = scalar_lea.vmem [#allocation4], %s154
        %s156 = smul.u32 2, %s18
        %p157 = scmp.lt.s32.totalorder %s156, 3
        %s158 = scalar_select %p157, %s156, 3
        %s159 = smul.addr %s158, 8
        %s160 = scalar_lea.vmem %s1, %s159
        %s161 = smul.u32 2, %s18
        %s162 = smul.u32 2, %s18
        %p163 = scmp.lt.s32.totalorder %s162, 3
        %s164 = scalar_select %p163, %s162, 3
        %s165 = smul.addr %s164, 8
        %s166 = scalar_lea.vmem %s2, %s165
        %s167 = smul.u32 2, %s18
        %s168 = sld [smem:[#allocation3]]
        %v169 = vld [vmem:[%s160] sm:$0xff]
        %v170 = vld [vmem:[%s160 + $0x8] sm:$0xff]
        %v171 = vmul.f32 %v169, %v169
        %v172 = vmul.f32 %v170, %v170
        %v173 = vlaneseq
        %v174 = vand.u32 %v173, 127
        %v175 = vand.u32 %v174, 7
        %v176 = vstv %s168
        %vm177 = vcmp.ne.s32.totalorder %v175, %v176
        %v178 = vld [vmem:[%s166] sm:$0xff]
        %v179 = vld [vmem:[%s166 + $0x8] sm:$0xff]
        %vm180 = vcmp.eq.s32.totalorder %v178, %v176
        %vm181 = vcmp.eq.s32.totalorder %v179, %v176
        %v182 = vsel %vm180, 1, 0
        %v183 = vsel %vm181, 1, 0
        %v184 = vcvt.s32.f32 %v182
        %v185 = vcvt.s32.f32 %v183
        %v186 = vlaneseq
        %v187 = vshrl.u32 %v186, 7
        %v188 = vadd.s32 %v187, 8
        %v189 = vmul.u32 %v187, 8
        %v190 = vmul.u32 %v188, 8
        %vm191 = vcmp.ge.s32.totalorder %v174, %v189
        %vm192 = vcmp.ge.s32.totalorder %v174, %v190
        %v193 = vadd.s32 %v189, 8
        %v194 = vadd.s32 %v190, 8
        %vm195 = vcmp.lt.s32.totalorder %v174, %v193
        %vm196 = vcmp.lt.s32.totalorder %v174, %v194
        %vm197 = vmand %vm191, %vm195
        %vm198 = vmand %vm192, %vm196
        %v199 = vsel %vm197, 1, 0
        %v200 = vsel %vm198, 1, 0
        %v201 = vcvt.s32.f32 %v199
        %v202 = vcvt.s32.f32 %v200
        %vm203 = vcmask 130048
        %v205 = vsel %vm203, %v184, 0
        %v208 = vsel %vm203, %v185, 0
        %210 = vmatprep.subr.mxu0 0.0
        %211 = vmatpush1.msra.mxu0 %v201
        %212 = vmatprep.subr.mxu0 0.0
        %213 = vmatpush1.msra.mxu0 %v202
        %214 = vmatprep.subr.mxu0 0.0
        %215 = vmatpush1.msra.mxu0 0.0
        %216 = vmatprep.subr.mxu0 0.0
        %217 = vmatpush1.msra.mxu0 0.0
        %218 = vmatprep.subr.mxu0 0.0
        %219 = vmatpush1.msra.mxu0 0.0
        %220 = vmatprep.subr.mxu0 0.0
        %221 = vmatpush1.msra.mxu0 0.0
        %222 = vmatprep.subr.mxu0 0.0
        %223 = vmatpush1.msra.mxu0 0.0
        %224 = vmatprep.subr.mxu0 0.0
        %225 = vmatpush1.msra.mxu0 0.0
        %226 = vmatprep.subr.mxu0 0.0
        %227 = vmatpush1.msra.mxu0 0.0
        %228 = vmatprep.subr.mxu0 0.0
        %229 = vmatpush1.msra.mxu0 0.0
        %230 = vmatprep.subr.mxu0 0.0
        %231 = vmatpush1.msra.mxu0 0.0
        %232 = vmatprep.subr.mxu0 0.0
        %233 = vmatpush1.msra.mxu0 0.0
        %234 = vmatprep.subr.mxu0 0.0
        %235 = vmatpush1.msra.mxu0 0.0
        %236 = vmatprep.subr.mxu0 0.0
        %237 = vmatpush1.msra.mxu0 0.0
        %238 = vmatprep.subr.mxu0 0.0
        %239 = vmatpush1.msra.mxu0 0.0
        %240 = vmatprep.subr.mxu0 0.0
        %241 = vmatpush1.msra.mxu0 0.0
        %242 = vmatprep.subr.mxu0 0.0
        %243 = vmatpush1.msra.mxu0 0.0
        %244 = vmatprep.subr.mxu0 0.0
        %245 = vmatpush1.msra.mxu0 0.0
        %246 = vmatprep.subr.mxu0 0.0
        %247 = vmatpush1.msra.mxu0 0.0
        %248 = vmatprep.subr.mxu0 0.0
        %249 = vmatpush1.msra.mxu0 0.0
        %250 = vmatprep.subr.mxu0 0.0
        %251 = vmatpush1.msra.mxu0 0.0
        %252 = vmatprep.subr.mxu0 0.0
        %253 = vmatpush1.msra.mxu0 0.0
        %254 = vmatprep.subr.mxu0 0.0
        %255 = vmatpush1.msra.mxu0 0.0
        %256 = vmatprep.subr.mxu0 0.0
        %257 = vmatpush1.msra.mxu0 0.0
        %258 = vmatprep.subr.mxu0 0.0
        %259 = vmatpush1.msra.mxu0 0.0
        %260 = vmatprep.subr.mxu0 0.0
        %261 = vmatpush1.msra.mxu0 0.0
        %262 = vmatprep.subr.mxu0 0.0
        %263 = vmatpush1.msra.mxu0 0.0
        %264 = vmatprep.subr.mxu0 0.0
        %265 = vmatpush1.msra.mxu0 0.0
        %266 = vmatprep.subr.mxu0 0.0
        %267 = vmatpush1.msra.mxu0 0.0
        %268 = vmatprep.subr.mxu0 0.0
        %269 = vmatpush1.msra.mxu0 0.0
        %270 = vmatprep.subr.mxu0 0.0
        %271 = vmatpush1.msra.mxu0 0.0
        %272 = vmatprep.subr.mxu0 0.0
        %273 = vmatpush1.msra.mxu0 0.0
        %274 = vmatprep.mubr.f32.mxu0 0.0
        %275 = vmatmul.mubr.f32.gmra.mrb[0].mxu0 %v205
        %v276 = vpop.f32.mrb[0].mxu0
        %v277 = vadd.f32 0.0, %v276
        %v278 = vpop.f32.mrb[0].mxu0
        %279 = vmatprep.mubr.f32.mxu0 0.0
        %280 = vmatmul.mubr.f32.gmra.mrb[0].mxu0 %v208
        %v281 = vpop.f32.mrb[0].mxu0
        %v282 = vadd.f32 0.0, %v281
        %v283 = vpop.f32.mrb[0].mxu0
        %284 = vdwg.mxu0
        %vm285 = vcmp.gt.f32.partialorder %v277, 0.5
        %vm286 = vcmp.gt.f32.partialorder %v282, 0.5
        %vm287 = vmand %vm285, %vm177
        %vm288 = vmand %vm286, %vm177
        %v289 = vsel %vm287, %v171, 0.0
        %v290 = vsel %vm288, %v172, 0.0
        %v291 = vadd.f32 %v289, %v290
        %292 = vadd.xlane.f32.xlu0 %v291
        %v293 = vpop.xlane.xlu0 %292
        %v294 = vrot.slane %v293, 4
        %v295 = vadd.f32 %v293, %v294
        %v296 = vrot.slane %v295, 2
        %v297 = vadd.f32 %v295, %v296
        %v298 = vrot.slane %v297, 1
        %v299 = vadd.f32 %v297, %v298
        %s300 = vtos %v299
        %vm301 = vcmp.eq.s32.totalorder %v187, 0
        %vm302 = vcmp.eq.s32.totalorder %v174, 0
        %vm303 = vmand %vm301, %vm302
        %v304 = vstv %s300
        %v305 = vsel %vm303, %v304, 0.0
        %306 = vst [vmem:[%s155] sm:$0xff] %v305
        %s307 = sand.u32 %s78, 1
        %s308 = scalar_lea.sflag [#allocation5], %s307
        %s309 = sand.u32 %s78, 1
        %s310 = smul.addr %s309, 8
        %s311 = scalar_lea.vmem [#allocation4], %s310
        // Predicated region
        $region29: #{tpu_custom_call.1} parent=27 // pred_check
          %p312 = pneg %p88
        $region30: #{tpu_custom_call.1} parent=27 // pred_check_branch
          %314 = sbr.rel (%p312) target = $region32
        $region31: #{tpu_custom_call.1} parent=27 // pred_region
          %s316 = ssub.s32 128, 128
          %317 = vsyncadd %s308, %s316
          %s318 = smul.addr %s18, 128
          %s319 = scalar_lea.hbm %s3, %s318
          %s321 = sshll.u32 %s311, 4
          %s322 = int_to_ptr.vmem [resolvable:$true] %s321
          %324 = dma.vmem_to_hbm [thread:$0]  %s322, 128, %s319, %s308
        $region32: #{tpu_custom_call.1} parent=27 // pred_fallthru
          _
      $region28: #{tpu_custom_call.1} parent=5 // pred_fallthru
        _
      %p325 = scmp.le.s32.totalorder 2, %s13
      // Predicated region
      $region33: #{tpu_custom_call.1} parent=5 // pred_check
        %p326 = pneg %p325
      $region34: #{tpu_custom_call.1} parent=5 // pred_check_branch
        %328 = sbr.rel (%p326) target = $region36
      $region35: #{tpu_custom_call.1} parent=5 // pred_region
        %s329 = ssub.s32 %s13, 2
        // Predicated region
        $region37: #{tpu_custom_call.1} parent=35 // pred_check
          %p330 = pneg %p94
        $region38: #{tpu_custom_call.1} parent=35 // pred_check_branch
          %332 = sbr.rel (%p330) target = $region40
        $region39: #{tpu_custom_call.1} parent=35 // pred_region
          %s333 = sand.u32 %s79, 1
          %s334 = scalar_lea.sflag [#allocation5], %s333
          %s335 = sand.u32 %s79, 1
          %s336 = smul.addr %s335, 8
          %s337 = scalar_lea.vmem [#allocation4], %s336
          %338 = dma.done %s334, 128
        $region40: #{tpu_custom_call.1} parent=35 // pred_fallthru
          _
      $region36: #{tpu_custom_call.1} parent=5 // pred_fallthru
        _
    $region6: #{tpu_custom_call.1} parent=1 // loop_footer
      %s17 = sadd.s32 1, %s13
    $region7: #{tpu_custom_call.1} parent=1 // loop_footer_branch
      %12 = sbr.rel target = $region3
    $region8: #{tpu_custom_call.1} parent=1 // loop_exit
      _
    %339 = vsyncpa [#allocation5], 1
    %s340 = scalar_lea.sflag [#allocation5], 1
    %341 = vsyncpa %s340, 1

</llo_original>
